<compile_context>
chip_gen: v5e
topology: v5e:2x2
jax: 0.10.0
libtpu: 0.0.40
codegen_flags: <defaults>
</compile_context>

<pallas_src>
import jax
import jax.numpy as jnp
from jax import lax
from jax.experimental import pallas as pl
from jax.experimental.pallas import tpu as pltpu


def _round_up(x: int, m: int) -> int:
    return ((x + m - 1) // m) * m


def _pad2d(a, rows, cols):
    r, c = a.shape
    if r == rows and c == cols:
        return a
    return jnp.pad(a, ((0, rows - r), (0, cols - c)))


# Contract last dim of lhs with last dim of rhs: (m, k) . (n, k) -> (m, n).
_DN_LAST_LAST = (((1,), (1,)), ((), ()))


def _lora_kernel(x_ref, w_ref, xb_ref, a_ref, bias_ref, o_ref, acc_ref):
    """Base matmul accumulated over K; LoRA up-projection + bias at finalize."""
    k = pl.program_id(2)

    @pl.when(k == 0)
    def _init():
        acc_ref[...] = jnp.zeros_like(acc_ref)

    # x (tm, tk) . W (tn, tk), contracted along K -> (tm, tn), f32 accumulate.
    acc_ref[...] += lax.dot_general(
        x_ref[...], w_ref[...], _DN_LAST_LAST,
        preferred_element_type=jnp.float32)

    @pl.when(k == pl.num_programs(2) - 1)
    def _finalize():
        # Up-projection: xB (tm, r_pad) . (scale*A) (tn, r_pad) -> (tm, tn).
        # Native-dtype operands; one small MXU pass per output tile.
        lora = lax.dot_general(
            xb_ref[...], a_ref[...], _DN_LAST_LAST,
            preferred_element_type=jnp.float32)
        y = acc_ref[...] + lora + bias_ref[...].astype(jnp.float32)
        o_ref[...] = y.astype(o_ref.dtype)


def _base_kernel(x_ref, w_ref, bias_ref, o_ref, acc_ref):
    """Plain linear (adapter disabled): no LoRA inputs, no LoRA matmul."""
    k = pl.program_id(2)

    @pl.when(k == 0)
    def _init():
        acc_ref[...] = jnp.zeros_like(acc_ref)

    acc_ref[...] += lax.dot_general(
        x_ref[...], w_ref[...], _DN_LAST_LAST,
        preferred_element_type=jnp.float32)

    @pl.when(k == pl.num_programs(2) - 1)
    def _finalize():
        y = acc_ref[...] + bias_ref[...].astype(jnp.float32)
        o_ref[...] = y.astype(o_ref.dtype)


def lora_linear(x, w, bias, delta_a, delta_b, delta_bias,
                alpha, rank, beta, adapter_enabled=True,
                *, tm=512, tn=512, tk=1024, vmem_limit_bytes=48 * 1024 * 1024):
    """LoRA linear forward.  x: (..., in_features) -> (..., out_features).

    Defaults (tm=tn=512, tk=1024) keep the double-buffered VMEM working set
    ~12 MiB: safe on v5e/v6e (128 MiB) and v7x (64 MiB).  On v6e/v5e tk can be
    raised to 2048+ with a larger vmem_limit_bytes; keep tiles <=~24-28 MiB of
    double-buffered VMEM on v7x.
    """
    out_features, in_features = w.shape
    lead = x.shape[:-1]
    x2d = x.reshape(-1, in_features)
    m = x2d.shape[0]
    dtype = x.dtype
    itemsize = jnp.dtype(dtype).itemsize

    # Fold the bias path once in the wrapper (f32).
    bias_f32 = (bias.astype(jnp.float32) if bias is not None
                else jnp.zeros((out_features,), jnp.float32))
    if adapter_enabled and (delta_bias is not None):
        bias_f32 = bias_f32 + float(beta) * delta_bias.astype(jnp.float32)
    # TODO(synk): the module's pathological branch (base bias is None but
    # delta_bias is set -> weight replaced by beta*delta_bias) is not replicated.

    # Tile sizes: second-minor dims rounded to the dtype's sublane packing,
    # minor dims to 128 lanes (lane-dense output stores).
    sub = max(8, 32 // itemsize)          # 8 f32, 16 bf16, 32 int8/fp8
    tm = min(_round_up(tm, sub), _round_up(m, sub))
    tn = min(_round_up(tn, 128), _round_up(out_features, 128))
    tk = min(_round_up(tk, 128), _round_up(in_features, 128))
    m_pad = _round_up(m, tm)
    n_pad = _round_up(out_features, tn)
    k_pad = _round_up(in_features, tk)

    # Zero-pad to the tile grid (zeros are exact for every matmul involved).
    x_p = _pad2d(x2d, m_pad, k_pad)
    w_p = _pad2d(w, n_pad, k_pad)
    bias_p = _pad2d(bias_f32.reshape(1, out_features), 1, n_pad)

    grid = (m_pad // tm, n_pad // tn, k_pad // tk)
    n_i, n_j, n_k = grid

    x_spec = pl.BlockSpec((tm, tk), lambda i, j, k: (i, k))
    w_spec = pl.BlockSpec((tn, tk), lambda i, j, k: (j, k))
    bias_spec = pl.BlockSpec((1, tn), lambda i, j, k: (0, j))
    out_spec = pl.BlockSpec((tm, tn), lambda i, j, k: (i, j))

    if adapter_enabled:
        # Hoisted LoRA down-projection: xB = x @ B^T, an (m, r) skinny matmul,
        # computed ONCE here rather than once per (j, k) grid step in-kernel.
        scale = float(alpha) / float(rank)
        a_scaled = (scale * delta_a.astype(jnp.float32)).astype(w.dtype)
        xb = lax.dot_general(x2d, delta_b.astype(dtype), _DN_LAST_LAST,
                             preferred_element_type=jnp.float32).astype(dtype)
        r = int(delta_a.shape[1])
        r_pad = _round_up(max(r, 1), 128)            # lane-dense rank dim
        xb_p = _pad2d(xb, m_pad, r_pad)
        a_p = _pad2d(a_scaled, n_pad, r_pad)

        kernel = _lora_kernel
        in_specs = [
            x_spec, w_spec,
            pl.BlockSpec((tm, r_pad), lambda i, j, k: (i, 0)),   # xB
            pl.BlockSpec((tn, r_pad), lambda i, j, k: (j, 0)),   # scale*A
            bias_spec,
        ]
        args = (x_p, w_p, xb_p, a_p, bias_p)
        flops = 2 * m_pad * n_pad * k_pad + 2 * m_pad * n_pad * r_pad
        bytes_accessed = (itemsize * (x_p.size * n_j + w_p.size * n_i
                                      + xb_p.size * n_j + a_p.size * n_i)
                          + 4 * bias_p.size * n_i
                          + itemsize * m_pad * n_pad)
    else:
        kernel = _base_kernel
        in_specs = [x_spec, w_spec, bias_spec]
        args = (x_p, w_p, bias_p)
        flops = 2 * m_pad * n_pad * k_pad
        bytes_accessed = (itemsize * (x_p.size * n_j + w_p.size * n_i)
                          + 4 * bias_p.size * n_i
                          + itemsize * m_pad * n_pad)

    out = pl.pallas_call(
        kernel,
        out_shape=jax.ShapeDtypeStruct((m_pad, n_pad), dtype),
        grid_spec=pltpu.PrefetchScalarGridSpec(
            num_scalar_prefetch=0,
            grid=grid,
            in_specs=in_specs,
            out_specs=out_spec,
            scratch_shapes=[pltpu.VMEM((tm, tn), jnp.float32)],   # f32 accumulator
        ),
        compiler_params=pltpu.CompilerParams(
            dimension_semantics=("parallel", "parallel", "arbitrary"),
            vmem_limit_bytes=int(vmem_limit_bytes)),
        cost_estimate=pl.CostEstimate(
            flops=int(flops), transcendentals=0,
            bytes_accessed=int(bytes_accessed)),
    )(*args)

    return out[:m, :out_features].reshape(*lead, out_features)


if __name__ == "__main__":
    # Test 1: small shapes (single grid step after padding/clamping).
    batch, seq, in_features, out_features, rank = 2, 16, 32, 32, 4
    alpha, beta = 8.0, 1.0

    key = jax.random.PRNGKey(0)
    kx, kw, kb, ka, kb2, kdb = jax.random.split(key, 6)

    x = jax.random.normal(kx, (batch, seq, in_features), dtype=jnp.float32)
    w_base = jax.random.normal(kw, (out_features, in_features), dtype=jnp.float32) * 0.1
    bias_base = jax.random.normal(kb, (out_features,), dtype=jnp.float32) * 0.1

    # Kaiming-uniform-like init for the LoRA factors (deterministic).
    bound_a = (6.0 / ((1 + 5.0) * rank)) ** 0.5
    bound_b = (6.0 / ((1 + 5.0) * in_features)) ** 0.5
    delta_a = jax.random.uniform(ka, (out_features, rank), jnp.float32, -bound_a, bound_a)
    delta_b = jax.random.uniform(kb2, (rank, in_features), jnp.float32, -bound_b, bound_b)
    delta_bias = jax.random.normal(kdb, (out_features,), dtype=jnp.float32) * 0.01

    y = lora_linear(x, w_base, bias_base, delta_a, delta_b, delta_bias,
                    alpha=alpha, rank=rank, beta=beta, adapter_enabled=True)
    y = jax.block_until_ready(y)

    w_eff = w_base + (alpha / rank) * (delta_a @ delta_b)
    b_eff = bias_base + beta * delta_bias
    y_ref = x @ w_eff.T + b_eff
    assert y.shape == (batch, seq, out_features)
    assert jnp.allclose(y, y_ref, atol=2e-3, rtol=2e-3), \
        float(jnp.max(jnp.abs(y - y_ref)))

    # Disabled-adapter path matches the base linear (trace-time specialized).
    y_off = jax.block_until_ready(
        lora_linear(x, w_base, bias_base, delta_a, delta_b, delta_bias,
                    alpha=alpha, rank=rank, beta=beta, adapter_enabled=False))
    assert jnp.allclose(y_off, x @ w_base.T + bias_base, atol=2e-3, rtol=2e-3)

    # Test 2: multi-tile (3 x 2 x 2) grid with small explicit tiles.
    b2, s2, k2, n2, r2 = 2, 24, 512, 512, 4
    k3, k4, k5, k6, k7, k8 = jax.random.split(jax.random.PRNGKey(0), 6)
    x2 = jax.random.normal(k3, (b2, s2, k2), dtype=jnp.float32)
    w2 = jax.random.normal(k4, (n2, k2), dtype=jnp.float32) * 0.05
    bias2 = jax.random.normal(k5, (n2,), dtype=jnp.float32) * 0.1
    da2 = jax.random.normal(k6, (n2, r2), dtype=jnp.float32) * 0.1
    db2 = jax.random.normal(k7, (r2, k2), dtype=jnp.float32) * 0.1
    dbias2 = jax.random.normal(k8, (n2,), dtype=jnp.float32) * 0.01

    y2 = jax.block_until_ready(
        lora_linear(x2, w2, bias2, da2, db2, dbias2,
                    alpha=alpha, rank=r2, beta=beta, adapter_enabled=True,
                    tm=16, tn=256, tk=256))
    y2_ref = x2 @ (w2 + (alpha / r2) * (da2 @ db2)).T + (bias2 + beta * dbias2)
    assert y2.shape == (b2, s2, n2)
    assert jnp.allclose(y2, y2_ref, atol=5e-3, rtol=5e-3), \
        float(jnp.max(jnp.abs(y2 - y2_ref)))

    print("KERNEL_OK")
</pallas_src>

<mosaic_0001>
module attributes {stable_mosaic.version = 11 : i64} {
  func.func @_lora_kernel(%arg0: i32, %arg1: i32, %arg2: i32, %arg3: memref<32x128xf32, #tpu.memory_space<vmem>>, %arg4: memref<128x128xf32, #tpu.memory_space<vmem>>, %arg5: memref<32x128xf32, #tpu.memory_space<vmem>>, %arg6: memref<128x128xf32, #tpu.memory_space<vmem>>, %arg7: memref<1x128xf32, #tpu.memory_space<vmem>>, %arg8: memref<32x128xf32, #tpu.memory_space<vmem>>, %arg9: memref<32x128xf32, #tpu.memory_space<vmem>>) attributes {dimension_semantics = [#tpu.dimension_semantics<parallel>, #tpu.dimension_semantics<parallel>, #tpu.dimension_semantics<arbitrary>], iteration_bounds = array<i64: 1, 1, 1>, scalar_prefetch = 0 : i64, scratch_operands = 1 : i64, tpu.core_type = #tpu.core_type<tc>, window_params = [{transform_indices = @transform_0, window_bounds = array<i64: 32, 128>}, {transform_indices = @transform_1, window_bounds = array<i64: 128, 128>}, {transform_indices = @transform_2, window_bounds = array<i64: 32, 128>}, {transform_indices = @transform_3, window_bounds = array<i64: 128, 128>}, {transform_indices = @transform_4, window_bounds = array<i64: 1, 128>}, {transform_indices = @transform_5, window_bounds = array<i64: 32, 128>}]} {
    %c0_i32 = arith.constant 0 : i32
    %0 = arith.cmpi eq, %arg2, %c0_i32 : i32
    %1 = arith.extui %0 : i1 to i32
    %c0_i32_0 = arith.constant 0 : i32
    %2 = arith.cmpi ne, %1, %c0_i32_0 : i32
    scf.if %2 {
      %cst_10 = arith.constant 0.000000e+00 : f32
      %12 = vector.broadcast %cst_10 : f32 to vector<32x128xf32>
      %c0_11 = arith.constant 0 : index
      %c0_12 = arith.constant 0 : index
      %13 = vector.load %arg9[%c0_11, %c0_12] : memref<32x128xf32, #tpu.memory_space<vmem>>, vector<32x128xf32>
      tpu.vector_store %arg9[%c0_11, %c0_12], %12 {strides = array<i32>} : memref<32x128xf32, #tpu.memory_space<vmem>>, vector<32x128xf32>,
    } else {
    }
    %c0 = arith.constant 0 : index
    %c0_1 = arith.constant 0 : index
    %3 = vector.load %arg9[%c0, %c0_1] : memref<32x128xf32, #tpu.memory_space<vmem>>, vector<32x128xf32>
    %c0_2 = arith.constant 0 : index
    %c0_3 = arith.constant 0 : index
    %4 = vector.load %arg3[%c0_2, %c0_3] : memref<32x128xf32, #tpu.memory_space<vmem>>, vector<32x128xf32>
    %c0_4 = arith.constant 0 : index
    %c0_5 = arith.constant 0 : index
    %5 = vector.load %arg4[%c0_4, %c0_5] : memref<128x128xf32, #tpu.memory_space<vmem>>, vector<128x128xf32>
    %cst = arith.constant dense<0.000000e+00> : vector<32x128xf32>
    %6 = tpu.matmul %4, %5, %cst {dimension_numbers = #tpu.dot_dimension_numbers<[1], [1], [0], [0], [0, 0, 1, 0], [], []>} : vector<32x128xf32>, vector<128x128xf32>, vector<32x128xf32> -> vector<32x128xf32>
    %7 = arith.addf %3, %6 : vector<32x128xf32>
    %c0_6 = arith.constant 0 : index
    %c0_7 = arith.constant 0 : index
    %8 = vector.load %arg9[%c0_6, %c0_7] : memref<32x128xf32, #tpu.memory_space<vmem>>, vector<32x128xf32>
    tpu.vector_store %arg9[%c0_6, %c0_7], %7 {strides = array<i32>} : memref<32x128xf32, #tpu.memory_space<vmem>>, vector<32x128xf32>,
    %c0_i32_8 = arith.constant 0 : i32
    %9 = arith.cmpi eq, %arg2, %c0_i32_8 : i32
    %10 = arith.extui %9 : i1 to i32
    %c0_i32_9 = arith.constant 0 : i32
    %11 = arith.cmpi ne, %10, %c0_i32_9 : i32
    scf.if %11 {
      %c0_10 = arith.constant 0 : index
      %c0_11 = arith.constant 0 : index
      %12 = vector.load %arg5[%c0_10, %c0_11] : memref<32x128xf32, #tpu.memory_space<vmem>>, vector<32x128xf32>
      %c0_12 = arith.constant 0 : index
      %c0_13 = arith.constant 0 : index
      %13 = vector.load %arg6[%c0_12, %c0_13] : memref<128x128xf32, #tpu.memory_space<vmem>>, vector<128x128xf32>
      %cst_14 = arith.constant dense<0.000000e+00> : vector<32x128xf32>
      %14 = tpu.matmul %12, %13, %cst_14 {dimension_numbers = #tpu.dot_dimension_numbers<[1], [1], [0], [0], [0, 0, 1, 0], [], []>} : vector<32x128xf32>, vector<128x128xf32>, vector<32x128xf32> -> vector<32x128xf32>
      %c0_15 = arith.constant 0 : index
      %c0_16 = arith.constant 0 : index
      %15 = vector.load %arg9[%c0_15, %c0_16] : memref<32x128xf32, #tpu.memory_space<vmem>>, vector<32x128xf32>
      %16 = arith.addf %15, %14 : vector<32x128xf32>
      %c0_17 = arith.constant 0 : index
      %c0_18 = arith.constant 0 : index
      %17 = vector.load %arg7[%c0_17, %c0_18] : memref<1x128xf32, #tpu.memory_space<vmem>>, vector<1x128xf32>
      %18 = vector.broadcast %17 : vector<1x128xf32> to vector<32x128xf32>
      %19 = arith.addf %16, %18 : vector<32x128xf32>
      %c0_19 = arith.constant 0 : index
      %c0_20 = arith.constant 0 : index
      %20 = vector.load %arg8[%c0_19, %c0_20] : memref<32x128xf32, #tpu.memory_space<vmem>>, vector<32x128xf32>
      tpu.vector_store %arg8[%c0_19, %c0_20], %19 {strides = array<i32>} : memref<32x128xf32, #tpu.memory_space<vmem>>, vector<32x128xf32>,
    } else {
    }
    return
  }
  func.func @transform_0(%arg0: i32, %arg1: i32, %arg2: i32) -> (i32, i32) {
    %c0_i32 = arith.constant 0 : i32
    return %arg0, %arg2 : i32, i32
  }
  func.func @transform_1(%arg0: i32, %arg1: i32, %arg2: i32) -> (i32, i32) {
    %c0_i32 = arith.constant 0 : i32
    return %arg1, %arg2 : i32, i32
  }
  func.func @transform_2(%arg0: i32, %arg1: i32, %arg2: i32) -> (i32, i32) {
    %c0_i32 = arith.constant 0 : i32
    %c0_i32_0 = arith.constant 0 : i32
    return %arg0, %c0_i32 : i32, i32
  }
  func.func @transform_3(%arg0: i32, %arg1: i32, %arg2: i32) -> (i32, i32) {
    %c0_i32 = arith.constant 0 : i32
    %c0_i32_0 = arith.constant 0 : i32
    return %arg1, %c0_i32 : i32, i32
  }
  func.func @transform_4(%arg0: i32, %arg1: i32, %arg2: i32) -> (i32, i32) {
    %c0_i32 = arith.constant 0 : i32
    %c0_i32_0 = arith.constant 0 : i32
    return %c0_i32, %arg1 : i32, i32
  }
  func.func @transform_5(%arg0: i32, %arg1: i32, %arg2: i32) -> (i32, i32) {
    %c0_i32 = arith.constant 0 : i32
    return %arg0, %arg1 : i32, i32
  }
}

</mosaic_0001>

<llo_original>
// kernel: tpu_custom_call.1
$region0: #{tpu_custom_call.1}
  #allocation0 [shape = 'u32[]', space=smem, size = 0x4, offset = 0x4, fixed_abs, tag = 'smem constant byte address 0x4 - core index']
  #allocation1 [shape = 'u32[72,128]{1,0:T(1,128)}', space=vmem, size = 0x9000, scoped, tag = 'internal scratch']
  #allocation2 [shape = 'f32[32,128]{1,0:T(8,128)}', space=vmem, size = 0x4000, scoped, tag = 'scratch operand']
  %s0 = inlined_call_operand.hbm [shape: f32[32,128], index: 0, kind: input, shape index: {}]
  %s1 = inlined_call_operand.hbm [shape: f32[128,128], index: 1, kind: input, shape index: {}]
  %s2 = inlined_call_operand.hbm [shape: f32[32,128], index: 2, kind: input, shape index: {}]
  %s3 = inlined_call_operand.hbm [shape: f32[128,128], index: 3, kind: input, shape index: {}]
  %s4 = inlined_call_operand.vmem [shape: f32[1,128], index: 4, kind: input, shape index: {}]
  %s5 = inlined_call_operand.hbm [shape: f32[32,128], index: 5, kind: output, shape index: {}]
  %s6 = sld [smem:[#allocation0]]
  $region54: #{tpu_custom_call.1} parent=0
    _
  %s8 = ssub.s32 1, %s6
  %s9 = scalar_select 0, %s8, %s6
  $region1: #{tpu_custom_call.1} parent=0
    #allocation3 [shape = 'u8[16384]{0}', space=vmem, size = 0x4000, scoped, tag = 'input window, operand 0, single buffered']
    #allocation4 [shape = 's32[1]{0}', space=sflag, size = 0x4, scoped, tag = 'scoped memory for tpu_custom_call.1']
    #allocation5 [shape = 's32[1]{0}', space=sflag, size = 0x4, scoped, tag = 'scoped memory for tpu_custom_call.1']
    #allocation6 [shape = 'u8[65536]{0}', space=vmem, size = 0x10000, scoped, tag = 'input window, operand 1, single buffered']
    #allocation7 [shape = 's32[1]{0}', space=sflag, size = 0x4, scoped, tag = 'scoped memory for tpu_custom_call.1']
    #allocation8 [shape = 'u8[16384]{0}', space=vmem, size = 0x4000, scoped, tag = 'input window, operand 2, single buffered']
    #allocation9 [shape = 'u8[65536]{0}', space=vmem, size = 0x10000, scoped, tag = 'input window, operand 3, single buffered']
    #allocation10 [shape = 's32[1]{0}', space=sflag, size = 0x4, scoped, tag = 'scoped memory for tpu_custom_call.1']
    #allocation11 [shape = 'u8[16384]{0}', space=vmem, size = 0x4000, scoped, tag = 'output window, operand 0, single buffered']
    %10 = vsyncpa [#allocation4], 0
    %11 = vsyncpa [#allocation7], 0
    %12 = vsyncpa [#allocation10], 0
    %13 = vsyncpa [#allocation5], 0
    // Predicated region
    $region2: #{tpu_custom_call.1} parent=1 // pred_check
      _
    $region3: #{tpu_custom_call.1} parent=1 // pred_check_branch
      %15 = sbr.rel (0) target = $region5
    $region4: #{tpu_custom_call.1} parent=1 // pred_region
      %17 = vsyncadd [#allocation4], 0
      %s18 = sshll.u32 %s0, 4
      %s19 = int_to_ptr.hbm [resolvable:$true] %s18
      %s20 = sshll.u32 [#allocation3], 4
      %s21 = int_to_ptr.vmem [resolvable:$true] %s20
      %26 = dma.hbm_to_vmem [thread:$0]  %s19, 512, %s21, [#allocation4], 128, 128, 8
    $region5: #{tpu_custom_call.1} parent=1 // pred_fallthru
      _
    // Predicated region
    $region6: #{tpu_custom_call.1} parent=1 // pred_check
      _
    $region7: #{tpu_custom_call.1} parent=1 // pred_check_branch
      %28 = sbr.rel (0) target = $region9
    $region8: #{tpu_custom_call.1} parent=1 // pred_region
      %30 = vsyncadd [#allocation7], 0
      %s31 = sshll.u32 %s1, 4
      %s32 = int_to_ptr.hbm [resolvable:$true] %s31
      %s33 = sshll.u32 [#allocation6], 4
      %s34 = int_to_ptr.vmem [resolvable:$true] %s33
      %39 = dma.hbm_to_vmem [thread:$0]  %s32, 2048, %s34, [#allocation7], 128, 128, 8
    $region9: #{tpu_custom_call.1} parent=1 // pred_fallthru
      _
    // Predicated region
    $region10: #{tpu_custom_call.1} parent=1 // pred_check
      _
    $region11: #{tpu_custom_call.1} parent=1 // pred_check_branch
      %41 = sbr.rel (0) target = $region13
    $region12: #{tpu_custom_call.1} parent=1 // pred_region
      %43 = vsyncadd [#allocation7], 0
      %s44 = sshll.u32 %s2, 4
      %s45 = int_to_ptr.hbm [resolvable:$true] %s44
      %s46 = sshll.u32 [#allocation8], 4
      %s47 = int_to_ptr.vmem [resolvable:$true] %s46
      %52 = dma.hbm_to_vmem [thread:$0]  %s45, 512, %s47, [#allocation7], 128, 128, 8
    $region13: #{tpu_custom_call.1} parent=1 // pred_fallthru
      _
    // Predicated region
    $region14: #{tpu_custom_call.1} parent=1 // pred_check
      _
    $region15: #{tpu_custom_call.1} parent=1 // pred_check_branch
      %54 = sbr.rel (0) target = $region17
    $region16: #{tpu_custom_call.1} parent=1 // pred_region
      %56 = vsyncadd [#allocation10], 0
      %s57 = sshll.u32 %s3, 4
      %s58 = int_to_ptr.hbm [resolvable:$true] %s57
      %s59 = sshll.u32 [#allocation9], 4
      %s60 = int_to_ptr.vmem [resolvable:$true] %s59
      %65 = dma.hbm_to_vmem [thread:$0]  %s58, 2048, %s60, [#allocation10], 128, 128, 8
    $region17: #{tpu_custom_call.1} parent=1 // pred_fallthru
      _
    // Predicated region
    $region18: #{tpu_custom_call.1} parent=1 // pred_check
      _
    $region19: #{tpu_custom_call.1} parent=1 // pred_check_branch
      %67 = sbr.rel (0) target = $region21
    $region20: #{tpu_custom_call.1} parent=1 // pred_region
      _
    $region21: #{tpu_custom_call.1} parent=1 // pred_fallthru
      _
    // Predicated region
    $region22: #{tpu_custom_call.1} parent=1 // pred_check
      _
    $region23: #{tpu_custom_call.1} parent=1 // pred_check_branch
      %69 = sbr.rel (0) target = $region25
    $region24: #{tpu_custom_call.1} parent=1 // pred_region
      %71 = dma.done [#allocation4], 512
    $region25: #{tpu_custom_call.1} parent=1 // pred_fallthru
      _
    // Predicated region
    $region26: #{tpu_custom_call.1} parent=1 // pred_check
      _
    $region27: #{tpu_custom_call.1} parent=1 // pred_check_branch
      %73 = sbr.rel (0) target = $region29
    $region28: #{tpu_custom_call.1} parent=1 // pred_region
      %75 = dma.done [#allocation7], 2048
    $region29: #{tpu_custom_call.1} parent=1 // pred_fallthru
      _
    // Predicated region
    $region30: #{tpu_custom_call.1} parent=1 // pred_check
      _
    $region31: #{tpu_custom_call.1} parent=1 // pred_check_branch
      %77 = sbr.rel (0) target = $region33
    $region32: #{tpu_custom_call.1} parent=1 // pred_region
      %79 = dma.done [#allocation7], 512
    $region33: #{tpu_custom_call.1} parent=1 // pred_fallthru
      _
    // Predicated region
    $region34: #{tpu_custom_call.1} parent=1 // pred_check
      _
    $region35: #{tpu_custom_call.1} parent=1 // pred_check_branch
      %81 = sbr.rel (0) target = $region37
    $region36: #{tpu_custom_call.1} parent=1 // pred_region
      %83 = dma.done [#allocation10], 2048
    $region37: #{tpu_custom_call.1} parent=1 // pred_fallthru
      _
    %p84 = scmp.eq.s32.totalorder 0, 0
    // Predicated region
    $region38: #{tpu_custom_call.1} parent=1 // pred_check
      %p85 = pneg %p84
    $region39: #{tpu_custom_call.1} parent=1 // pred_check_branch
      %87 = sbr.rel (%p85) target = $region41
    $region40: #{tpu_custom_call.1} parent=1 // pred_region
      %88 = vst [vmem:[#allocation2] sm:$0xff] 0.0
      %89 = vst [vmem:[#allocation2 + $0x8] sm:$0xff] 0.0
      %90 = vst [vmem:[#allocation2 + $0x10] sm:$0xff] 0.0
      %91 = vst [vmem:[#allocation2 + $0x18] sm:$0xff] 0.0
    $region41: #{tpu_custom_call.1} parent=1 // pred_fallthru
      _
    %v92 = vld [vmem:[#allocation2] sm:$0xff]
    %v93 = vld [vmem:[#allocation2 + $0x8] sm:$0xff]
    %v94 = vld [vmem:[#allocation2 + $0x10] sm:$0xff]
    %v95 = vld [vmem:[#allocation2 + $0x18] sm:$0xff]
    %v96 = vld [vmem:[#allocation3] sm:$0xff]
    %v97 = vld [vmem:[#allocation3 + $0x8] sm:$0xff]
    %v98 = vld [vmem:[#allocation3 + $0x10] sm:$0xff]
    %v99 = vld [vmem:[#allocation3 + $0x18] sm:$0xff]
    %v100 = vld [vmem:[#allocation6] sm:$0xff]
    %v101 = vld [vmem:[#allocation6 + $0x8] sm:$0xff]
    %v102 = vld [vmem:[#allocation6 + $0x10] sm:$0xff]
    %v103 = vld [vmem:[#allocation6 + $0x18] sm:$0xff]
    %v104 = vld [vmem:[#allocation6 + $0x20] sm:$0xff]
    %v105 = vld [vmem:[#allocation6 + $0x28] sm:$0xff]
    %v106 = vld [vmem:[#allocation6 + $0x30] sm:$0xff]
    %v107 = vld [vmem:[#allocation6 + $0x38] sm:$0xff]
    %v108 = vld [vmem:[#allocation6 + $0x40] sm:$0xff]
    %v109 = vld [vmem:[#allocation6 + $0x48] sm:$0xff]
    %v110 = vld [vmem:[#allocation6 + $0x50] sm:$0xff]
    %v111 = vld [vmem:[#allocation6 + $0x58] sm:$0xff]
    %v112 = vld [vmem:[#allocation6 + $0x60] sm:$0xff]
    %v113 = vld [vmem:[#allocation6 + $0x68] sm:$0xff]
    %v114 = vld [vmem:[#allocation6 + $0x70] sm:$0xff]
    %v115 = vld [vmem:[#allocation6 + $0x78] sm:$0xff]
    %116 = vmatpush.xpose.msra.mxu0 %v115
    %117 = vmatpush.xpose.msra.mxu0 %v114
    %118 = vmatpush.xpose.msra.mxu0 %v113
    %119 = vmatpush.xpose.msra.mxu0 %v112
    %120 = vmatpush.xpose.msra.mxu0 %v111
    %121 = vmatpush.xpose.msra.mxu0 %v110
    %122 = vmatpush.xpose.msra.mxu0 %v109
    %123 = vmatpush.xpose.msra.mxu0 %v108
    %124 = vmatpush.xpose.msra.mxu0 %v107
    %125 = vmatpush.xpose.msra.mxu0 %v106
    %126 = vmatpush.xpose.msra.mxu0 %v105
    %127 = vmatpush.xpose.msra.mxu0 %v104
    %128 = vmatpush.xpose.msra.mxu0 %v103
    %129 = vmatpush.xpose.msra.mxu0 %v102
    %130 = vmatpush.xpose.msra.mxu0 %v101
    %131 = vmatpush.xpose.msra.mxu0 %v100
    %132 = vmatmul.f32.gmra.mxu0 %v96
    %v133 = vpop.f32.mrf.mxu0
    %v134 = vadd.f32 0.0, %v133
    %135 = vmatmul.f32.gmra.mxu0 %v97
    %v136 = vpop.f32.mrf.mxu0
    %v137 = vadd.f32 0.0, %v136
    %138 = vmatmul.f32.gmra.mxu0 %v98
    %v139 = vpop.f32.mrf.mxu0
    %v140 = vadd.f32 0.0, %v139
    %141 = vmatmul.f32.gmra.mxu0 %v99
    %v142 = vpop.f32.mrf.mxu0
    %v143 = vadd.f32 0.0, %v142
    %144 = vdwg.mxu0
    %v145 = vadd.f32 %v92, %v134
    %v146 = vadd.f32 %v93, %v137
    %v147 = vadd.f32 %v94, %v140
    %v148 = vadd.f32 %v95, %v143
    %149 = vst [vmem:[#allocation2] sm:$0xff] %v145
    %150 = vst [vmem:[#allocation2 + $0x8] sm:$0xff] %v146
    %151 = vst [vmem:[#allocation2 + $0x10] sm:$0xff] %v147
    %152 = vst [vmem:[#allocation2 + $0x18] sm:$0xff] %v148
    // Predicated region
    $region42: #{tpu_custom_call.1} parent=1 // pred_check
      %p153 = pneg %p84
    $region43: #{tpu_custom_call.1} parent=1 // pred_check_branch
      %155 = sbr.rel (%p153) target = $region45
    $region44: #{tpu_custom_call.1} parent=1 // pred_region
      %v156 = vld [vmem:[#allocation8] sm:$0xff]
      %v157 = vld [vmem:[#allocation8 + $0x8] sm:$0xff]
      %v158 = vld [vmem:[#allocation8 + $0x10] sm:$0xff]
      %v159 = vld [vmem:[#allocation8 + $0x18] sm:$0xff]
      %v160 = vld [vmem:[#allocation9] sm:$0xff]
      %v161 = vld [vmem:[#allocation9 + $0x8] sm:$0xff]
      %v162 = vld [vmem:[#allocation9 + $0x10] sm:$0xff]
      %v163 = vld [vmem:[#allocation9 + $0x18] sm:$0xff]
      %v164 = vld [vmem:[#allocation9 + $0x20] sm:$0xff]
      %v165 = vld [vmem:[#allocation9 + $0x28] sm:$0xff]
      %v166 = vld [vmem:[#allocation9 + $0x30] sm:$0xff]
      %v167 = vld [vmem:[#allocation9 + $0x38] sm:$0xff]
      %v168 = vld [vmem:[#allocation9 + $0x40] sm:$0xff]
      %v169 = vld [vmem:[#allocation9 + $0x48] sm:$0xff]
      %v170 = vld [vmem:[#allocation9 + $0x50] sm:$0xff]
      %v171 = vld [vmem:[#allocation9 + $0x58] sm:$0xff]
      %v172 = vld [vmem:[#allocation9 + $0x60] sm:$0xff]
      %v173 = vld [vmem:[#allocation9 + $0x68] sm:$0xff]
      %v174 = vld [vmem:[#allocation9 + $0x70] sm:$0xff]
      %v175 = vld [vmem:[#allocation9 + $0x78] sm:$0xff]
      %176 = vmatpush.xpose.msra.mxu0 %v175
      %177 = vmatpush.xpose.msra.mxu0 %v174
      %178 = vmatpush.xpose.msra.mxu0 %v173
      %179 = vmatpush.xpose.msra.mxu0 %v172
      %180 = vmatpush.xpose.msra.mxu0 %v171
      %181 = vmatpush.xpose.msra.mxu0 %v170
      %182 = vmatpush.xpose.msra.mxu0 %v169
      %183 = vmatpush.xpose.msra.mxu0 %v168
      %184 = vmatpush.xpose.msra.mxu0 %v167
      %185 = vmatpush.xpose.msra.mxu0 %v166
      %186 = vmatpush.xpose.msra.mxu0 %v165
      %187 = vmatpush.xpose.msra.mxu0 %v164
      %188 = vmatpush.xpose.msra.mxu0 %v163
      %189 = vmatpush.xpose.msra.mxu0 %v162
      %190 = vmatpush.xpose.msra.mxu0 %v161
      %191 = vmatpush.xpose.msra.mxu0 %v160
      %192 = vmatmul.f32.gmra.mxu0 %v156
      %v193 = vpop.f32.mrf.mxu0
      %v194 = vadd.f32 0.0, %v193
      %195 = vmatmul.f32.gmra.mxu0 %v157
      %v196 = vpop.f32.mrf.mxu0
      %v197 = vadd.f32 0.0, %v196
      %198 = vmatmul.f32.gmra.mxu0 %v158
      %v199 = vpop.f32.mrf.mxu0
      %v200 = vadd.f32 0.0, %v199
      %201 = vmatmul.f32.gmra.mxu0 %v159
      %v202 = vpop.f32.mrf.mxu0
      %v203 = vadd.f32 0.0, %v202
      %204 = vdwg.mxu0
      %v205 = vld [vmem:[#allocation2] sm:$0xff]
      %v206 = vld [vmem:[#allocation2 + $0x8] sm:$0xff]
      %v207 = vld [vmem:[#allocation2 + $0x10] sm:$0xff]
      %v208 = vld [vmem:[#allocation2 + $0x18] sm:$0xff]
      %v209 = vadd.f32 %v205, %v194
      %v210 = vadd.f32 %v206, %v197
      %v211 = vadd.f32 %v207, %v200
      %v212 = vadd.f32 %v208, %v203
      %v213 = vld [vmem:[%s4] sm:$0x1]
      %v215 = vperm.slane %v213, 0
      %v217 = vadd.f32 %v209, %v215
      %v218 = vadd.f32 %v210, %v215
      %v219 = vadd.f32 %v211, %v215
      %v220 = vadd.f32 %v212, %v215
      %221 = vst [vmem:[#allocation11] sm:$0xff] %v217
      %222 = vst [vmem:[#allocation11 + $0x8] sm:$0xff] %v218
      %223 = vst [vmem:[#allocation11 + $0x10] sm:$0xff] %v219
      %224 = vst [vmem:[#allocation11 + $0x18] sm:$0xff] %v220
    $region45: #{tpu_custom_call.1} parent=1 // pred_fallthru
      _
    // Predicated region
    $region46: #{tpu_custom_call.1} parent=1 // pred_check
      _
    $region47: #{tpu_custom_call.1} parent=1 // pred_check_branch
      %226 = sbr.rel (0) target = $region49
    $region48: #{tpu_custom_call.1} parent=1 // pred_region
      %228 = vsyncadd [#allocation5], 0
      %s229 = sshll.u32 [#allocation11], 4
      %s230 = int_to_ptr.vmem [resolvable:$true] %s229
      %s231 = sshll.u32 %s5, 4
      %s232 = int_to_ptr.hbm [resolvable:$true] %s231
      %237 = dma.vmem_to_hbm [thread:$0]  %s230, 512, %s232, [#allocation5], 128, 128, 8
    $region49: #{tpu_custom_call.1} parent=1 // pred_fallthru
      _
    // Predicated region
    $region50: #{tpu_custom_call.1} parent=1 // pred_check
      _
    $region51: #{tpu_custom_call.1} parent=1 // pred_check_branch
      %239 = sbr.rel (0) target = $region53
    $region52: #{tpu_custom_call.1} parent=1 // pred_region
      %241 = dma.done [#allocation5], 512
    $region53: #{tpu_custom_call.1} parent=1 // pred_fallthru
      _
    %242 = vsyncpa [#allocation4], 1
    %243 = vsyncpa [#allocation7], 1
    %244 = vsyncpa [#allocation10], 1
    %245 = vsyncpa [#allocation5], 1

</llo_original>
